<compile_context>
chip_gen: v5e
topology: v5e:2x2
jax: 0.10.0
libtpu: 0.0.40
codegen_flags: <defaults>
</compile_context>

<pallas_src>
import jax
import jax.numpy as jnp
from jax.experimental import pallas as pl
from jax.experimental.pallas import tpu as pltpu

LEAKY_SLOPE = 0.01   # nn.LeakyReLU default
BN_EPS = 1e-5        # nn.BatchNorm1d default


def _fused_block(h, w_ref, vec_ref, inv_n, contract_last_of_both=False):
    """One Linear + LeakyReLU + BatchNorm1d block producing feature-major output.

    h:       (in_features, batch) f32, batch on the lane axis
             (or (batch, in_features) when contract_last_of_both=True, layer 1)
    w_ref:   (out_features, in_features)  -- PyTorch [out, in] layout, used as-is
    vec_ref: (out_features, 2) packed [bias_eff | gamma]
             (BN beta was folded into the next layer's bias at pack time)
    Returns (out_features, batch).
    """
    vec = vec_ref[...]
    bias = vec[:, 0:1]
    gamma = vec[:, 1:2]

    if contract_last_of_both:
        # Layer 1: x arrives batch-major (B, in); contract in_features of both
        # operands so no wrapper-side transpose (and no extra HBM round trip).
        z = jax.lax.dot_general(
            w_ref[...], h,
            dimension_numbers=(((1,), (1,)), ((), ())),
            preferred_element_type=jnp.float32) + bias
    else:
        z = jnp.dot(w_ref[...], h, preferred_element_type=jnp.float32) + bias

    # LeakyReLU
    z = jnp.where(z >= 0, z, LEAKY_SLOPE * z)

    # BatchNorm1d, training-mode stats, two-pass (numerically robust) variance.
    mean = jnp.sum(z, axis=1, keepdims=True) * inv_n        # (out, 1)
    d = z - mean
    var = jnp.sum(d * d, axis=1, keepdims=True) * inv_n     # biased var, as in PyTorch
    scale = gamma * jax.lax.rsqrt(var + BN_EPS)              # (out, 1)
    return d * scale                                          # beta folded into next bias


def mlp_kernel(x_ref,
               w1_ref, v1_ref,
               w2_ref, v2_ref,
               w3_ref, v3_ref,
               w4_ref, v4_ref,
               head_ref,
               o_ref):
    # x_ref: (batch, in_features); batch is static from the ref shape.
    n = x_ref.shape[0]
    inv_n = 1.0 / float(n)

    x = x_ref[...].astype(jnp.float32)
    h = _fused_block(x, w1_ref, v1_ref, inv_n, contract_last_of_both=True)  # (128, B)
    h = _fused_block(h, w2_ref, v2_ref, inv_n)                              # (64, B)
    h = _fused_block(h, w3_ref, v3_ref, inv_n)                              # (16, B)
    h = _fused_block(h, w4_ref, v4_ref, inv_n)                              # (8, B)

    # Head: Linear(8,1) + Sigmoid as a VPU multiply + sublane reduce
    # (avoids an M=1 MXU push/pop whose result-FIFO drain dominates).
    head = head_ref[...]                 # (9, 1): rows 0..7 = w5 column, row 8 = b5_eff
    w5 = head[0:8, :]                    # (8, 1)
    b5 = head[8:9, :]                    # (1, 1)
    logits = jnp.sum(h * w5, axis=0, keepdims=True) + b5      # (1, B), lane-dense
    o_ref[...] = jax.nn.sigmoid(logits).astype(o_ref.dtype)


def _vmem_limit_bytes(batch, in_features):
    """Generation-aware VMEM cap: size from the actual working set, clamp to
    ~80% of the chip's physical VMEM (64 MiB on v7x, 128 MiB on v5e/v6e)."""
    act = 4 * batch * (in_features + 2 * 128 + 64 + 16 + 8 + 1)
    params = 4 * (128 * in_features + 128 * 64 + 64 * 16 + 16 * 8 + 9)
    params += 4 * 2 * (128 + 64 + 16 + 8)
    est = 2 * act + params + (4 << 20)          # headroom for temporaries / tile padding
    try:
        cap = int(pltpu.get_tpu_info().vmem_capacity_bytes)
    except Exception:
        cap = 64 << 20                          # conservative fallback (v7x physical)
    hard = (cap * 4) // 5                       # leave ~20% for Mosaic internal scratch
    return int(max(min(est, hard), 8 << 20))


@jax.jit
def neural_network_forward(x, kernel_params):
    """x: (batch, in_features) f32.  kernel_params: output of pack_params()."""
    batch, in_features = x.shape
    vmem_spec = pl.BlockSpec(memory_space=pltpu.MemorySpace.VMEM)
    n_in = 1 + len(kernel_params)
    out = pl.pallas_call(
        mlp_kernel,
        out_shape=jax.ShapeDtypeStruct((1, batch), jnp.float32),
        in_specs=[vmem_spec] * n_in,
        out_specs=vmem_spec,
        compiler_params=pltpu.CompilerParams(
            vmem_limit_bytes=_vmem_limit_bytes(batch, in_features)),
    )(x, *kernel_params)
    return out.reshape(batch, 1)               # (1, B) -> (B, 1): layout-free reshape


# ----------------------------------------------------------------------------
# Parameter construction (PyTorch layout) + packing into the kernel format.
# ----------------------------------------------------------------------------

def init_params(key, input_size):
    """Deterministic synthetic parameters matching the PyTorch module layout."""
    dims = [input_size, 128, 64, 16, 8, 1]
    keys = jax.random.split(key, 20)
    linears, bns = [], []
    ki = 0
    for li in range(5):
        fan_in, fan_out = dims[li], dims[li + 1]
        bound = float(fan_in) ** -0.5
        w = jax.random.uniform(keys[ki], (fan_out, fan_in), jnp.float32, -bound, bound)
        ki += 1
        b = jax.random.uniform(keys[ki], (fan_out,), jnp.float32, -bound, bound)
        ki += 1
        linears.append((w, b))
        if li < 4:  # BatchNorm after the first four blocks
            gamma = 1.0 + 0.1 * jax.random.normal(keys[ki], (fan_out,), jnp.float32)
            ki += 1
            beta = 0.1 * jax.random.normal(keys[ki], (fan_out,), jnp.float32)
            ki += 1
            bns.append((gamma, beta))
    return linears, bns


def pack_params(linears, bns):
    """Pack PyTorch-layout params into the kernel's argument tuple.

    BN beta_i is folded into the next Linear's bias (b_eff = b_{i+1} + W_{i+1} @ beta_i),
    which is exact up to f32 reassociation and removes one VALU add per element per
    BN layer from the kernel.
    """
    ws = [w for w, _ in linears]
    bs = [b for _, b in linears]
    gammas = [g for g, _ in bns]
    betas = [bt for _, bt in bns]

    eff_b = [bs[0]]
    for i in range(1, 5):
        eff_b.append(bs[i] + ws[i] @ betas[i - 1])

    packed = []
    for i in range(4):
        packed.append(ws[i])                                        # (out, in), used as-is
        packed.append(jnp.stack([eff_b[i], gammas[i]], axis=1))     # (out, 2)
    w5 = ws[4]                                                      # (1, 8)
    packed.append(jnp.concatenate([w5.reshape(8, 1),
                                   eff_b[4].reshape(1, 1)], axis=0))  # (9, 1)
    return tuple(packed)


def reference_forward(x, linears, bns):
    """Pure-JAX reference in standard (batch, features) orientation."""
    h = x
    for i in range(4):
        w, b = linears[i]
        gamma, beta = bns[i]
        h = jnp.dot(h, w.T, precision=jax.lax.Precision.HIGHEST) + b
        h = jnp.where(h >= 0, h, LEAKY_SLOPE * h)
        mean = jnp.mean(h, axis=0, keepdims=True)
        var = jnp.mean((h - mean) ** 2, axis=0, keepdims=True)
        h = (h - mean) * jax.lax.rsqrt(var + BN_EPS) * gamma + beta
    w5, b5 = linears[4]
    return jax.nn.sigmoid(jnp.dot(h, w5.T, precision=jax.lax.Precision.HIGHEST) + b5)


if __name__ == "__main__":
    key = jax.random.PRNGKey(0)
    k_x, k_p = jax.random.split(key)

    # Lane-dense batch (multiple of 128) so the VPU/MXU lane axis is fully used;
    # still a small shape for the demo.
    batch = 128
    input_size = 32
    x = jax.random.normal(k_x, (batch, input_size), jnp.float32)

    linears, bns = init_params(k_p, input_size)
    kernel_params = pack_params(linears, bns)

    y = neural_network_forward(x, kernel_params)
    y = jax.block_until_ready(y)

    y_ref = reference_forward(x, linears, bns)
    assert y.shape == (batch, 1)
    assert jnp.allclose(y, y_ref, atol=1e-4, rtol=1e-4), "mismatch vs JAX reference"

    print("KERNEL_OK")
</pallas_src>

<mosaic_0001>
module attributes {stable_mosaic.version = 11 : i64} {
  func.func @mlp_kernel(%arg0: memref<128x32xf32, #tpu.memory_space<vmem>>, %arg1: memref<128x32xf32, #tpu.memory_space<vmem>>, %arg2: memref<128x2xf32, #tpu.memory_space<vmem>>, %arg3: memref<64x128xf32, #tpu.memory_space<vmem>>, %arg4: memref<64x2xf32, #tpu.memory_space<vmem>>, %arg5: memref<16x64xf32, #tpu.memory_space<vmem>>, %arg6: memref<16x2xf32, #tpu.memory_space<vmem>>, %arg7: memref<8x16xf32, #tpu.memory_space<vmem>>, %arg8: memref<8x2xf32, #tpu.memory_space<vmem>>, %arg9: memref<9x1xf32, #tpu.memory_space<vmem>>, %arg10: memref<1x128xf32, #tpu.memory_space<vmem>>) attributes {dimension_semantics = [], scalar_prefetch = 0 : i64, scratch_operands = 0 : i64, tpu.core_type = #tpu.core_type<tc>} {
    %c0 = arith.constant 0 : index
    %c0_0 = arith.constant 0 : index
    %0 = vector.load %arg0[%c0, %c0_0] : memref<128x32xf32, #tpu.memory_space<vmem>>, vector<128x32xf32>
    %c0_1 = arith.constant 0 : index
    %c0_2 = arith.constant 0 : index
    %1 = vector.load %arg2[%c0_1, %c0_2] : memref<128x2xf32, #tpu.memory_space<vmem>>, vector<128x2xf32>
    %2 = vector.extract_strided_slice %1 {offsets = [0, 0], sizes = [128, 1], strides = [1, 1]} : vector<128x2xf32> to vector<128x1xf32>
    %3 = vector.extract_strided_slice %1 {offsets = [0, 1], sizes = [128, 1], strides = [1, 1]} : vector<128x2xf32> to vector<128x1xf32>
    %c0_3 = arith.constant 0 : index
    %c0_4 = arith.constant 0 : index
    %4 = vector.load %arg1[%c0_3, %c0_4] : memref<128x32xf32, #tpu.memory_space<vmem>>, vector<128x32xf32>
    %cst = arith.constant dense<0.000000e+00> : vector<128x128xf32>
    %5 = tpu.matmul %4, %0, %cst {dimension_numbers = #tpu.dot_dimension_numbers<[1], [1], [0], [0], [0, 0, 1, 0], [], []>} : vector<128x32xf32>, vector<128x32xf32>, vector<128x128xf32> -> vector<128x128xf32>
    %6 = vector.broadcast %2 : vector<128x1xf32> to vector<128x128xf32>
    %7 = arith.addf %5, %6 : vector<128x128xf32>
    %cst_5 = arith.constant 0.000000e+00 : f32
    %8 = vector.broadcast %cst_5 : f32 to vector<128x128xf32>
    %9 = arith.cmpf oge, %7, %8 : vector<128x128xf32>
    %cst_6 = arith.constant 0.00999999977 : f32
    %10 = vector.broadcast %cst_6 : f32 to vector<128x128xf32>
    %11 = arith.mulf %10, %7 : vector<128x128xf32>
    %12 = arith.select %9, %7, %11 : vector<128x128xi1>, vector<128x128xf32>
    %cst_7 = arith.constant dense<0.000000e+00> : vector<128xf32>
    %13 = vector.multi_reduction <add>, %12, %cst_7 [1] : vector<128x128xf32> to vector<128xf32>
    %14 = vector.shape_cast %13 : vector<128xf32> to vector<128x1xf32>
    %cst_8 = arith.constant 7.812500e-03 : f32
    %15 = vector.broadcast %cst_8 : f32 to vector<128x1xf32>
    %16 = arith.mulf %14, %15 : vector<128x1xf32>
    %17 = vector.broadcast %16 : vector<128x1xf32> to vector<128x128xf32>
    %18 = arith.subf %12, %17 : vector<128x128xf32>
    %19 = arith.mulf %18, %18 : vector<128x128xf32>
    %cst_9 = arith.constant dense<0.000000e+00> : vector<128xf32>
    %20 = vector.multi_reduction <add>, %19, %cst_9 [1] : vector<128x128xf32> to vector<128xf32>
    %21 = vector.shape_cast %20 : vector<128xf32> to vector<128x1xf32>
    %cst_10 = arith.constant 7.812500e-03 : f32
    %22 = vector.broadcast %cst_10 : f32 to vector<128x1xf32>
    %23 = arith.mulf %21, %22 : vector<128x1xf32>
    %cst_11 = arith.constant 9.99999974E-6 : f32
    %24 = vector.broadcast %cst_11 : f32 to vector<128x1xf32>
    %25 = arith.addf %23, %24 : vector<128x1xf32>
    %26 = math.rsqrt %25 : vector<128x1xf32>
    %27 = arith.mulf %3, %26 : vector<128x1xf32>
    %28 = vector.broadcast %27 : vector<128x1xf32> to vector<128x128xf32>
    %29 = arith.mulf %18, %28 : vector<128x128xf32>
    %c0_12 = arith.constant 0 : index
    %c0_13 = arith.constant 0 : index
    %30 = vector.load %arg4[%c0_12, %c0_13] : memref<64x2xf32, #tpu.memory_space<vmem>>, vector<64x2xf32>
    %31 = vector.extract_strided_slice %30 {offsets = [0, 0], sizes = [64, 1], strides = [1, 1]} : vector<64x2xf32> to vector<64x1xf32>
    %32 = vector.extract_strided_slice %30 {offsets = [0, 1], sizes = [64, 1], strides = [1, 1]} : vector<64x2xf32> to vector<64x1xf32>
    %c0_14 = arith.constant 0 : index
    %c0_15 = arith.constant 0 : index
    %33 = vector.load %arg3[%c0_14, %c0_15] : memref<64x128xf32, #tpu.memory_space<vmem>>, vector<64x128xf32>
    %cst_16 = arith.constant dense<0.000000e+00> : vector<64x128xf32>
    %34 = tpu.matmul %33, %29, %cst_16 {dimension_numbers = #tpu.dot_dimension_numbers<[1], [0], [0], [1], [0, 0, 1, 1], [], []>} : vector<64x128xf32>, vector<128x128xf32>, vector<64x128xf32> -> vector<64x128xf32>
    %35 = vector.broadcast %31 : vector<64x1xf32> to vector<64x128xf32>
    %36 = arith.addf %34, %35 : vector<64x128xf32>
    %cst_17 = arith.constant 0.000000e+00 : f32
    %37 = vector.broadcast %cst_17 : f32 to vector<64x128xf32>
    %38 = arith.cmpf oge, %36, %37 : vector<64x128xf32>
    %cst_18 = arith.constant 0.00999999977 : f32
    %39 = vector.broadcast %cst_18 : f32 to vector<64x128xf32>
    %40 = arith.mulf %39, %36 : vector<64x128xf32>
    %41 = arith.select %38, %36, %40 : vector<64x128xi1>, vector<64x128xf32>
    %cst_19 = arith.constant dense<0.000000e+00> : vector<64xf32>
    %42 = vector.multi_reduction <add>, %41, %cst_19 [1] : vector<64x128xf32> to vector<64xf32>
    %43 = vector.shape_cast %42 : vector<64xf32> to vector<64x1xf32>
    %cst_20 = arith.constant 7.812500e-03 : f32
    %44 = vector.broadcast %cst_20 : f32 to vector<64x1xf32>
    %45 = arith.mulf %43, %44 : vector<64x1xf32>
    %46 = vector.broadcast %45 : vector<64x1xf32> to vector<64x128xf32>
    %47 = arith.subf %41, %46 : vector<64x128xf32>
    %48 = arith.mulf %47, %47 : vector<64x128xf32>
    %cst_21 = arith.constant dense<0.000000e+00> : vector<64xf32>
    %49 = vector.multi_reduction <add>, %48, %cst_21 [1] : vector<64x128xf32> to vector<64xf32>
    %50 = vector.shape_cast %49 : vector<64xf32> to vector<64x1xf32>
    %cst_22 = arith.constant 7.812500e-03 : f32
    %51 = vector.broadcast %cst_22 : f32 to vector<64x1xf32>
    %52 = arith.mulf %50, %51 : vector<64x1xf32>
    %cst_23 = arith.constant 9.99999974E-6 : f32
    %53 = vector.broadcast %cst_23 : f32 to vector<64x1xf32>
    %54 = arith.addf %52, %53 : vector<64x1xf32>
    %55 = math.rsqrt %54 : vector<64x1xf32>
    %56 = arith.mulf %32, %55 : vector<64x1xf32>
    %57 = vector.broadcast %56 : vector<64x1xf32> to vector<64x128xf32>
    %58 = arith.mulf %47, %57 : vector<64x128xf32>
    %c0_24 = arith.constant 0 : index
    %c0_25 = arith.constant 0 : index
    %59 = vector.load %arg6[%c0_24, %c0_25] : memref<16x2xf32, #tpu.memory_space<vmem>>, vector<16x2xf32>
    %60 = vector.extract_strided_slice %59 {offsets = [0, 0], sizes = [16, 1], strides = [1, 1]} : vector<16x2xf32> to vector<16x1xf32>
    %61 = vector.extract_strided_slice %59 {offsets = [0, 1], sizes = [16, 1], strides = [1, 1]} : vector<16x2xf32> to vector<16x1xf32>
    %c0_26 = arith.constant 0 : index
    %c0_27 = arith.constant 0 : index
    %62 = vector.load %arg5[%c0_26, %c0_27] : memref<16x64xf32, #tpu.memory_space<vmem>>, vector<16x64xf32>
    %cst_28 = arith.constant dense<0.000000e+00> : vector<16x128xf32>
    %63 = tpu.matmul %62, %58, %cst_28 {dimension_numbers = #tpu.dot_dimension_numbers<[1], [0], [0], [1], [0, 0, 1, 1], [], []>} : vector<16x64xf32>, vector<64x128xf32>, vector<16x128xf32> -> vector<16x128xf32>
    %64 = vector.broadcast %60 : vector<16x1xf32> to vector<16x128xf32>
    %65 = arith.addf %63, %64 : vector<16x128xf32>
    %cst_29 = arith.constant 0.000000e+00 : f32
    %66 = vector.broadcast %cst_29 : f32 to vector<16x128xf32>
    %67 = arith.cmpf oge, %65, %66 : vector<16x128xf32>
    %cst_30 = arith.constant 0.00999999977 : f32
    %68 = vector.broadcast %cst_30 : f32 to vector<16x128xf32>
    %69 = arith.mulf %68, %65 : vector<16x128xf32>
    %70 = arith.select %67, %65, %69 : vector<16x128xi1>, vector<16x128xf32>
    %cst_31 = arith.constant dense<0.000000e+00> : vector<16xf32>
    %71 = vector.multi_reduction <add>, %70, %cst_31 [1] : vector<16x128xf32> to vector<16xf32>
    %72 = vector.shape_cast %71 : vector<16xf32> to vector<16x1xf32>
    %cst_32 = arith.constant 7.812500e-03 : f32
    %73 = vector.broadcast %cst_32 : f32 to vector<16x1xf32>
    %74 = arith.mulf %72, %73 : vector<16x1xf32>
    %75 = vector.broadcast %74 : vector<16x1xf32> to vector<16x128xf32>
    %76 = arith.subf %70, %75 : vector<16x128xf32>
    %77 = arith.mulf %76, %76 : vector<16x128xf32>
    %cst_33 = arith.constant dense<0.000000e+00> : vector<16xf32>
    %78 = vector.multi_reduction <add>, %77, %cst_33 [1] : vector<16x128xf32> to vector<16xf32>
    %79 = vector.shape_cast %78 : vector<16xf32> to vector<16x1xf32>
    %cst_34 = arith.constant 7.812500e-03 : f32
    %80 = vector.broadcast %cst_34 : f32 to vector<16x1xf32>
    %81 = arith.mulf %79, %80 : vector<16x1xf32>
    %cst_35 = arith.constant 9.99999974E-6 : f32
    %82 = vector.broadcast %cst_35 : f32 to vector<16x1xf32>
    %83 = arith.addf %81, %82 : vector<16x1xf32>
    %84 = math.rsqrt %83 : vector<16x1xf32>
    %85 = arith.mulf %61, %84 : vector<16x1xf32>
    %86 = vector.broadcast %85 : vector<16x1xf32> to vector<16x128xf32>
    %87 = arith.mulf %76, %86 : vector<16x128xf32>
    %c0_36 = arith.constant 0 : index
    %c0_37 = arith.constant 0 : index
    %88 = vector.load %arg8[%c0_36, %c0_37] : memref<8x2xf32, #tpu.memory_space<vmem>>, vector<8x2xf32>
    %89 = vector.extract_strided_slice %88 {offsets = [0, 0], sizes = [8, 1], strides = [1, 1]} : vector<8x2xf32> to vector<8x1xf32>
    %90 = vector.extract_strided_slice %88 {offsets = [0, 1], sizes = [8, 1], strides = [1, 1]} : vector<8x2xf32> to vector<8x1xf32>
    %c0_38 = arith.constant 0 : index
    %c0_39 = arith.constant 0 : index
    %91 = vector.load %arg7[%c0_38, %c0_39] : memref<8x16xf32, #tpu.memory_space<vmem>>, vector<8x16xf32>
    %cst_40 = arith.constant dense<0.000000e+00> : vector<8x128xf32>
    %92 = tpu.matmul %91, %87, %cst_40 {dimension_numbers = #tpu.dot_dimension_numbers<[1], [0], [0], [1], [0, 0, 1, 1], [], []>} : vector<8x16xf32>, vector<16x128xf32>, vector<8x128xf32> -> vector<8x128xf32>
    %93 = vector.broadcast %89 : vector<8x1xf32> to vector<8x128xf32>
    %94 = arith.addf %92, %93 : vector<8x128xf32>
    %cst_41 = arith.constant 0.000000e+00 : f32
    %95 = vector.broadcast %cst_41 : f32 to vector<8x128xf32>
    %96 = arith.cmpf oge, %94, %95 : vector<8x128xf32>
    %cst_42 = arith.constant 0.00999999977 : f32
    %97 = vector.broadcast %cst_42 : f32 to vector<8x128xf32>
    %98 = arith.mulf %97, %94 : vector<8x128xf32>
    %99 = arith.select %96, %94, %98 : vector<8x128xi1>, vector<8x128xf32>
    %cst_43 = arith.constant dense<0.000000e+00> : vector<8xf32>
    %100 = vector.multi_reduction <add>, %99, %cst_43 [1] : vector<8x128xf32> to vector<8xf32>
    %101 = vector.shape_cast %100 : vector<8xf32> to vector<8x1xf32>
    %cst_44 = arith.constant 7.812500e-03 : f32
    %102 = vector.broadcast %cst_44 : f32 to vector<8x1xf32>
    %103 = arith.mulf %101, %102 : vector<8x1xf32>
    %104 = vector.broadcast %103 : vector<8x1xf32> to vector<8x128xf32>
    %105 = arith.subf %99, %104 : vector<8x128xf32>
    %106 = arith.mulf %105, %105 : vector<8x128xf32>
    %cst_45 = arith.constant dense<0.000000e+00> : vector<8xf32>
    %107 = vector.multi_reduction <add>, %106, %cst_45 [1] : vector<8x128xf32> to vector<8xf32>
    %108 = vector.shape_cast %107 : vector<8xf32> to vector<8x1xf32>
    %cst_46 = arith.constant 7.812500e-03 : f32
    %109 = vector.broadcast %cst_46 : f32 to vector<8x1xf32>
    %110 = arith.mulf %108, %109 : vector<8x1xf32>
    %cst_47 = arith.constant 9.99999974E-6 : f32
    %111 = vector.broadcast %cst_47 : f32 to vector<8x1xf32>
    %112 = arith.addf %110, %111 : vector<8x1xf32>
    %113 = math.rsqrt %112 : vector<8x1xf32>
    %114 = arith.mulf %90, %113 : vector<8x1xf32>
    %115 = vector.broadcast %114 : vector<8x1xf32> to vector<8x128xf32>
    %116 = arith.mulf %105, %115 : vector<8x128xf32>
    %c0_48 = arith.constant 0 : index
    %c0_49 = arith.constant 0 : index
    %117 = vector.load %arg9[%c0_48, %c0_49] : memref<9x1xf32, #tpu.memory_space<vmem>>, vector<9x1xf32>
    %118 = vector.extract_strided_slice %117 {offsets = [0, 0], sizes = [8, 1], strides = [1, 1]} : vector<9x1xf32> to vector<8x1xf32>
    %119 = vector.extract_strided_slice %117 {offsets = [8, 0], sizes = [1, 1], strides = [1, 1]} : vector<9x1xf32> to vector<1x1xf32>
    %120 = vector.broadcast %118 : vector<8x1xf32> to vector<8x128xf32>
    %121 = arith.mulf %116, %120 : vector<8x128xf32>
    %cst_50 = arith.constant dense<0.000000e+00> : vector<128xf32>
    %122 = vector.multi_reduction <add>, %121, %cst_50 [0] : vector<8x128xf32> to vector<128xf32>
    %123 = vector.shape_cast %122 : vector<128xf32> to vector<1x128xf32>
    %124 = vector.broadcast %119 : vector<1x1xf32> to vector<1x128xf32>
    %125 = arith.addf %123, %124 : vector<1x128xf32>
    %126 = arith.negf %125 : vector<1x128xf32>
    %127 = math.exp %126 : vector<1x128xf32>
    %cst_51 = arith.constant 1.000000e+00 : f32
    %128 = vector.broadcast %cst_51 : f32 to vector<1x128xf32>
    %129 = arith.addf %128, %127 : vector<1x128xf32>
    %130 = arith.divf %128, %129 : vector<1x128xf32>
    %c0_52 = arith.constant 0 : index
    %c0_53 = arith.constant 0 : index
    %131 = vector.load %arg10[%c0_52, %c0_53] : memref<1x128xf32, #tpu.memory_space<vmem>>, vector<1x128xf32>
    tpu.vector_store %arg10[%c0_52, %c0_53], %130 {strides = array<i32>} : memref<1x128xf32, #tpu.memory_space<vmem>>, vector<1x128xf32>,
    return
  }
}

</mosaic_0001>

<llo_original>
// kernel: neural_network_forward.1
$region0: #{neural_network_forward.1}
  #allocation0 [shape = 'u32[]', space=smem, size = 0x4, offset = 0x4, fixed_abs, tag = 'smem constant byte address 0x4 - core index']
  #allocation1 [shape = 'u32[72,128]{1,0:T(1,128)}', space=vmem, size = 0x9000, scoped, tag = 'internal scratch']
  %s0 = inlined_call_operand.vmem [shape: f32[128,32], index: 0, kind: input, shape index: {}]
  %s1 = inlined_call_operand.vmem [shape: f32[128,32], index: 1, kind: input, shape index: {}]
  %s2 = inlined_call_operand.vmem [shape: f32[128,2], index: 2, kind: input, shape index: {}]
  %s3 = inlined_call_operand.vmem [shape: f32[64,128], index: 3, kind: input, shape index: {}]
  %s4 = inlined_call_operand.vmem [shape: f32[64,2], index: 4, kind: input, shape index: {}]
  %s5 = inlined_call_operand.vmem [shape: f32[16,64], index: 5, kind: input, shape index: {}]
  %s6 = inlined_call_operand.vmem [shape: f32[16,2], index: 6, kind: input, shape index: {}]
  %s7 = inlined_call_operand.vmem [shape: f32[8,16], index: 7, kind: input, shape index: {}]
  %s8 = inlined_call_operand.vmem [shape: f32[8,2], index: 8, kind: input, shape index: {}]
  %s9 = inlined_call_operand.vmem [shape: f32[9,1], index: 9, kind: input, shape index: {}]
  %s10 = inlined_call_operand.hbm [shape: f32[1,128], index: 10, kind: output, shape index: {}]
  %s11 = sld [smem:[#allocation0]]
  $region50: #{neural_network_forward.1} parent=0
    _
  %s13 = ssub.s32 1, %s11
  %s14 = scalar_select 0, %s13, %s11
  $region1: #{neural_network_forward.1} parent=0
    #allocation2 [shape = 'u8[512]{0}', space=vmem, size = 0x400, scoped, tag = 'output window, operand 0, single buffered']
    #allocation3 [shape = 's32[1]{0}', space=sflag, size = 0x4, scoped, tag = 'scoped memory for neural_network_forward.1']
    %15 = vsyncpa [#allocation3], 0
    // Predicated region
    $region2: #{neural_network_forward.1} parent=1 // pred_check
      _
    $region3: #{neural_network_forward.1} parent=1 // pred_check_branch
      %17 = sbr.rel (0) target = $region5
    $region4: #{neural_network_forward.1} parent=1 // pred_region
      _
    $region5: #{neural_network_forward.1} parent=1 // pred_fallthru
      _
    // Predicated region
    $region6: #{neural_network_forward.1} parent=1 // pred_check
      _
    $region7: #{neural_network_forward.1} parent=1 // pred_check_branch
      %19 = sbr.rel (0) target = $region9
    $region8: #{neural_network_forward.1} parent=1 // pred_region
      _
    $region9: #{neural_network_forward.1} parent=1 // pred_fallthru
      _
    // Predicated region
    $region10: #{neural_network_forward.1} parent=1 // pred_check
      _
    $region11: #{neural_network_forward.1} parent=1 // pred_check_branch
      %21 = sbr.rel (0) target = $region13
    $region12: #{neural_network_forward.1} parent=1 // pred_region
      _
    $region13: #{neural_network_forward.1} parent=1 // pred_fallthru
      _
    // Predicated region
    $region14: #{neural_network_forward.1} parent=1 // pred_check
      _
    $region15: #{neural_network_forward.1} parent=1 // pred_check_branch
      %23 = sbr.rel (0) target = $region17
    $region16: #{neural_network_forward.1} parent=1 // pred_region
      _
    $region17: #{neural_network_forward.1} parent=1 // pred_fallthru
      _
    // Predicated region
    $region18: #{neural_network_forward.1} parent=1 // pred_check
      _
    $region19: #{neural_network_forward.1} parent=1 // pred_check_branch
      %25 = sbr.rel (0) target = $region21
    $region20: #{neural_network_forward.1} parent=1 // pred_region
      _
    $region21: #{neural_network_forward.1} parent=1 // pred_fallthru
      _
    // Predicated region
    $region22: #{neural_network_forward.1} parent=1 // pred_check
      _
    $region23: #{neural_network_forward.1} parent=1 // pred_check_branch
      %27 = sbr.rel (0) target = $region25
    $region24: #{neural_network_forward.1} parent=1 // pred_region
      _
    $region25: #{neural_network_forward.1} parent=1 // pred_fallthru
      _
    // Predicated region
    $region26: #{neural_network_forward.1} parent=1 // pred_check
      _
    $region27: #{neural_network_forward.1} parent=1 // pred_check_branch
      %29 = sbr.rel (0) target = $region29
    $region28: #{neural_network_forward.1} parent=1 // pred_region
      _
    $region29: #{neural_network_forward.1} parent=1 // pred_fallthru
      _
    // Predicated region
    $region30: #{neural_network_forward.1} parent=1 // pred_check
      _
    $region31: #{neural_network_forward.1} parent=1 // pred_check_branch
      %31 = sbr.rel (0) target = $region33
    $region32: #{neural_network_forward.1} parent=1 // pred_region
      _
    $region33: #{neural_network_forward.1} parent=1 // pred_fallthru
      _
    // Predicated region
    $region34: #{neural_network_forward.1} parent=1 // pred_check
      _
    $region35: #{neural_network_forward.1} parent=1 // pred_check_branch
      %33 = sbr.rel (0) target = $region37
    $region36: #{neural_network_forward.1} parent=1 // pred_region
      _
    $region37: #{neural_network_forward.1} parent=1 // pred_fallthru
      _
    // Predicated region
    $region38: #{neural_network_forward.1} parent=1 // pred_check
      _
    $region39: #{neural_network_forward.1} parent=1 // pred_check_branch
      %35 = sbr.rel (0) target = $region41
    $region40: #{neural_network_forward.1} parent=1 // pred_region
      _
    $region41: #{neural_network_forward.1} parent=1 // pred_fallthru
      _
    %v36 = vld [vmem:[%s0] sm:$0xff]
    %v37 = vld [vmem:[%s0 + $0x8] sm:$0xff]
    %v38 = vld [vmem:[%s0 + $0x10] sm:$0xff]
    %v39 = vld [vmem:[%s0 + $0x18] sm:$0xff]
    %v40 = vld [vmem:[%s0 + $0x20] sm:$0xff]
    %v41 = vld [vmem:[%s0 + $0x28] sm:$0xff]
    %v42 = vld [vmem:[%s0 + $0x30] sm:$0xff]
    %v43 = vld [vmem:[%s0 + $0x38] sm:$0xff]
    %v44 = vld [vmem:[%s0 + $0x40] sm:$0xff]
    %v45 = vld [vmem:[%s0 + $0x48] sm:$0xff]
    %v46 = vld [vmem:[%s0 + $0x50] sm:$0xff]
    %v47 = vld [vmem:[%s0 + $0x58] sm:$0xff]
    %v48 = vld [vmem:[%s0 + $0x60] sm:$0xff]
    %v49 = vld [vmem:[%s0 + $0x68] sm:$0xff]
    %v50 = vld [vmem:[%s0 + $0x70] sm:$0xff]
    %v51 = vld [vmem:[%s0 + $0x78] sm:$0xff]
    %v52 = vld [vmem:[%s2] sm:$0xff]
    %v53 = vld [vmem:[%s2 + $0x8] sm:$0xff]
    %v54 = vld [vmem:[%s2 + $0x10] sm:$0xff]
    %v55 = vld [vmem:[%s2 + $0x18] sm:$0xff]
    %v56 = vld [vmem:[%s2 + $0x20] sm:$0xff]
    %v57 = vld [vmem:[%s2 + $0x28] sm:$0xff]
    %v58 = vld [vmem:[%s2 + $0x30] sm:$0xff]
    %v59 = vld [vmem:[%s2 + $0x38] sm:$0xff]
    %v60 = vld [vmem:[%s2 + $0x40] sm:$0xff]
    %v61 = vld [vmem:[%s2 + $0x48] sm:$0xff]
    %v62 = vld [vmem:[%s2 + $0x50] sm:$0xff]
    %v63 = vld [vmem:[%s2 + $0x58] sm:$0xff]
    %v64 = vld [vmem:[%s2 + $0x60] sm:$0xff]
    %v65 = vld [vmem:[%s2 + $0x68] sm:$0xff]
    %v66 = vld [vmem:[%s2 + $0x70] sm:$0xff]
    %v67 = vld [vmem:[%s2 + $0x78] sm:$0xff]
    %v68 = vld [vmem:[%s1] sm:$0xff]
    %v69 = vld [vmem:[%s1 + $0x8] sm:$0xff]
    %v70 = vld [vmem:[%s1 + $0x10] sm:$0xff]
    %v71 = vld [vmem:[%s1 + $0x18] sm:$0xff]
    %v72 = vld [vmem:[%s1 + $0x20] sm:$0xff]
    %v73 = vld [vmem:[%s1 + $0x28] sm:$0xff]
    %v74 = vld [vmem:[%s1 + $0x30] sm:$0xff]
    %v75 = vld [vmem:[%s1 + $0x38] sm:$0xff]
    %v76 = vld [vmem:[%s1 + $0x40] sm:$0xff]
    %v77 = vld [vmem:[%s1 + $0x48] sm:$0xff]
    %v78 = vld [vmem:[%s1 + $0x50] sm:$0xff]
    %v79 = vld [vmem:[%s1 + $0x58] sm:$0xff]
    %v80 = vld [vmem:[%s1 + $0x60] sm:$0xff]
    %v81 = vld [vmem:[%s1 + $0x68] sm:$0xff]
    %v82 = vld [vmem:[%s1 + $0x70] sm:$0xff]
    %v83 = vld [vmem:[%s1 + $0x78] sm:$0xff]
    %85 = vset.pattern.permute.xlu0 0
    %86 = vperm.xlu0 %85, %v52
    %v87 = vpop.permute.xlu0 %86
    %90 = vset.pattern.permute.xlu0 0
    %91 = vperm.xlu0 %90, %v53
    %v92 = vpop.permute.xlu0 %91
    %95 = vset.pattern.permute.xlu0 0
    %96 = vperm.xlu0 %95, %v54
    %v97 = vpop.permute.xlu0 %96
    %100 = vset.pattern.permute.xlu0 0
    %101 = vperm.xlu0 %100, %v55
    %v102 = vpop.permute.xlu0 %101
    %105 = vset.pattern.permute.xlu0 0
    %106 = vperm.xlu0 %105, %v56
    %v107 = vpop.permute.xlu0 %106
    %110 = vset.pattern.permute.xlu0 0
    %111 = vperm.xlu0 %110, %v57
    %v112 = vpop.permute.xlu0 %111
    %115 = vset.pattern.permute.xlu0 0
    %116 = vperm.xlu0 %115, %v58
    %v117 = vpop.permute.xlu0 %116
    %120 = vset.pattern.permute.xlu0 0
    %121 = vperm.xlu0 %120, %v59
    %v122 = vpop.permute.xlu0 %121
    %125 = vset.pattern.permute.xlu0 0
    %126 = vperm.xlu0 %125, %v60
    %v127 = vpop.permute.xlu0 %126
    %130 = vset.pattern.permute.xlu0 0
    %131 = vperm.xlu0 %130, %v61
    %v132 = vpop.permute.xlu0 %131
    %135 = vset.pattern.permute.xlu0 0
    %136 = vperm.xlu0 %135, %v62
    %v137 = vpop.permute.xlu0 %136
    %140 = vset.pattern.permute.xlu0 0
    %141 = vperm.xlu0 %140, %v63
    %v142 = vpop.permute.xlu0 %141
    %145 = vset.pattern.permute.xlu0 0
    %146 = vperm.xlu0 %145, %v64
    %v147 = vpop.permute.xlu0 %146
    %150 = vset.pattern.permute.xlu0 0
    %151 = vperm.xlu0 %150, %v65
    %v152 = vpop.permute.xlu0 %151
    %155 = vset.pattern.permute.xlu0 0
    %156 = vperm.xlu0 %155, %v66
    %v157 = vpop.permute.xlu0 %156
    %160 = vset.pattern.permute.xlu0 0
    %161 = vperm.xlu0 %160, %v67
    %v162 = vpop.permute.xlu0 %161
    %vm164 = vcmask 261120
    %v166 = vsel %vm164, %v68, 0
    %v169 = vsel %vm164, %v69, 0
    %v172 = vsel %vm164, %v70, 0
    %v175 = vsel %vm164, %v71, 0
    %v178 = vsel %vm164, %v72, 0
    %v181 = vsel %vm164, %v73, 0
    %v184 = vsel %vm164, %v74, 0
    %v187 = vsel %vm164, %v75, 0
    %v190 = vsel %vm164, %v76, 0
    %v193 = vsel %vm164, %v77, 0
    %v196 = vsel %vm164, %v78, 0
    %v199 = vsel %vm164, %v79, 0
    %v202 = vsel %vm164, %v80, 0
    %v205 = vsel %vm164, %v81, 0
    %v208 = vsel %vm164, %v82, 0
    %v211 = vsel %vm164, %v83, 0
    %v214 = vsel %vm164, %v36, 0
    %v217 = vsel %vm164, %v37, 0
    %v220 = vsel %vm164, %v38, 0
    %v223 = vsel %vm164, %v39, 0
    %v226 = vsel %vm164, %v40, 0
    %v229 = vsel %vm164, %v41, 0
    %v232 = vsel %vm164, %v42, 0
    %v235 = vsel %vm164, %v43, 0
    %v238 = vsel %vm164, %v44, 0
    %v241 = vsel %vm164, %v45, 0
    %v244 = vsel %vm164, %v46, 0
    %v247 = vsel %vm164, %v47, 0
    %v250 = vsel %vm164, %v48, 0
    %v253 = vsel %vm164, %v49, 0
    %v256 = vsel %vm164, %v50, 0
    %v259 = vsel %vm164, %v51, 0
    %261 = vmatpush.xpose.msra.mxu0 %v259
    %262 = vmatpush.xpose.msra.mxu0 %v256
    %263 = vmatpush.xpose.msra.mxu0 %v253
    %264 = vmatpush.xpose.msra.mxu0 %v250
    %265 = vmatpush.xpose.msra.mxu0 %v247
    %266 = vmatpush.xpose.msra.mxu0 %v244
    %267 = vmatpush.xpose.msra.mxu0 %v241
    %268 = vmatpush.xpose.msra.mxu0 %v238
    %269 = vmatpush.xpose.msra.mxu0 %v235
    %270 = vmatpush.xpose.msra.mxu0 %v232
    %271 = vmatpush.xpose.msra.mxu0 %v229
    %272 = vmatpush.xpose.msra.mxu0 %v226
    %273 = vmatpush.xpose.msra.mxu0 %v223
    %274 = vmatpush.xpose.msra.mxu0 %v220
    %275 = vmatpush.xpose.msra.mxu0 %v217
    %276 = vmatpush.xpose.msra.mxu0 %v214
    %277 = vmatmul.f32.gmra.mxu0 %v166
    %v278 = vpop.f32.mrf.mxu0
    %v279 = vadd.f32 %v87, %v278
    %280 = vmatmul.f32.gmra.mxu0 %v169
    %v281 = vpop.f32.mrf.mxu0
    %v282 = vadd.f32 %v92, %v281
    %283 = vmatmul.f32.gmra.mxu0 %v172
    %v284 = vpop.f32.mrf.mxu0
    %v285 = vadd.f32 %v97, %v284
    %286 = vmatmul.f32.gmra.mxu0 %v175
    %v287 = vpop.f32.mrf.mxu0
    %v288 = vadd.f32 %v102, %v287
    %289 = vmatmul.f32.gmra.mxu0 %v178
    %v290 = vpop.f32.mrf.mxu0
    %v291 = vadd.f32 %v107, %v290
    %292 = vmatmul.f32.gmra.mxu0 %v181
    %v293 = vpop.f32.mrf.mxu0
    %v294 = vadd.f32 %v112, %v293
    %295 = vmatmul.f32.gmra.mxu0 %v184
    %v296 = vpop.f32.mrf.mxu0
    %v297 = vadd.f32 %v117, %v296
    %298 = vmatmul.f32.gmra.mxu0 %v187
    %v299 = vpop.f32.mrf.mxu0
    %v300 = vadd.f32 %v122, %v299
    %301 = vmatmul.f32.gmra.mxu0 %v190
    %v302 = vpop.f32.mrf.mxu0
    %v303 = vadd.f32 %v127, %v302
    %304 = vmatmul.f32.gmra.mxu0 %v193
    %v305 = vpop.f32.mrf.mxu0
    %v306 = vadd.f32 %v132, %v305
    %307 = vmatmul.f32.gmra.mxu0 %v196
    %v308 = vpop.f32.mrf.mxu0
    %v309 = vadd.f32 %v137, %v308
    %310 = vmatmul.f32.gmra.mxu0 %v199
    %v311 = vpop.f32.mrf.mxu0
    %v312 = vadd.f32 %v142, %v311
    %313 = vmatmul.f32.gmra.mxu0 %v202
    %v314 = vpop.f32.mrf.mxu0
    %v315 = vadd.f32 %v147, %v314
    %316 = vmatmul.f32.gmra.mxu0 %v205
    %v317 = vpop.f32.mrf.mxu0
    %v318 = vadd.f32 %v152, %v317
    %319 = vmatmul.f32.gmra.mxu0 %v208
    %v320 = vpop.f32.mrf.mxu0
    %v321 = vadd.f32 %v157, %v320
    %322 = vmatmul.f32.gmra.mxu0 %v211
    %v323 = vpop.f32.mrf.mxu0
    %v324 = vadd.f32 %v162, %v323
    %325 = vdwg.mxu0
    %vm326 = vcmp.ge.f32.partialorder %v279, 0.0
    %vm327 = vcmp.ge.f32.partialorder %v282, 0.0
    %vm328 = vcmp.ge.f32.partialorder %v285, 0.0
    %vm329 = vcmp.ge.f32.partialorder %v288, 0.0
    %vm330 = vcmp.ge.f32.partialorder %v291, 0.0
    %vm331 = vcmp.ge.f32.partialorder %v294, 0.0
    %vm332 = vcmp.ge.f32.partialorder %v297, 0.0
    %vm333 = vcmp.ge.f32.partialorder %v300, 0.0
    %vm334 = vcmp.ge.f32.partialorder %v303, 0.0
    %vm335 = vcmp.ge.f32.partialorder %v306, 0.0
    %vm336 = vcmp.ge.f32.partialorder %v309, 0.0
    %vm337 = vcmp.ge.f32.partialorder %v312, 0.0
    %vm338 = vcmp.ge.f32.partialorder %v315, 0.0
    %vm339 = vcmp.ge.f32.partialorder %v318, 0.0
    %vm340 = vcmp.ge.f32.partialorder %v321, 0.0
    %vm341 = vcmp.ge.f32.partialorder %v324, 0.0
    %v342 = vmul.f32 %v279, 0.01
    %v343 = vmul.f32 %v282, 0.01
    %v344 = vmul.f32 %v285, 0.01
    %v345 = vmul.f32 %v288, 0.01
    %v346 = vmul.f32 %v291, 0.01
    %v347 = vmul.f32 %v294, 0.01
    %v348 = vmul.f32 %v297, 0.01
    %v349 = vmul.f32 %v300, 0.01
    %v350 = vmul.f32 %v303, 0.01
    %v351 = vmul.f32 %v306, 0.01
    %v352 = vmul.f32 %v309, 0.01
    %v353 = vmul.f32 %v312, 0.01
    %v354 = vmul.f32 %v315, 0.01
    %v355 = vmul.f32 %v318, 0.01
    %v356 = vmul.f32 %v321, 0.01
    %v357 = vmul.f32 %v324, 0.01
    %v358 = vsel %vm326, %v279, %v342
    %v359 = vsel %vm327, %v282, %v343
    %v360 = vsel %vm328, %v285, %v344
    %v361 = vsel %vm329, %v288, %v345
    %v362 = vsel %vm330, %v291, %v346
    %v363 = vsel %vm331, %v294, %v347
    %v364 = vsel %vm332, %v297, %v348
    %v365 = vsel %vm333, %v300, %v349
    %v366 = vsel %vm334, %v303, %v350
    %v367 = vsel %vm335, %v306, %v351
    %v368 = vsel %vm336, %v309, %v352
    %v369 = vsel %vm337, %v312, %v353
    %v370 = vsel %vm338, %v315, %v354
    %v371 = vsel %vm339, %v318, %v355
    %v372 = vsel %vm340, %v321, %v356
    %v373 = vsel %vm341, %v324, %v357
    %374 = vadd.xlane.f32.xlu0 %v358
    %v375 = vpop.xlane.xlu0 %374
    %376 = vadd.xlane.f32.xlu0 %v359
    %v377 = vpop.xlane.xlu0 %376
    %378 = vadd.xlane.f32.xlu0 %v360
    %v379 = vpop.xlane.xlu0 %378
    %380 = vadd.xlane.f32.xlu0 %v361
    %v381 = vpop.xlane.xlu0 %380
    %382 = vadd.xlane.f32.xlu0 %v362
    %v383 = vpop.xlane.xlu0 %382
    %384 = vadd.xlane.f32.xlu0 %v363
    %v385 = vpop.xlane.xlu0 %384
    %386 = vadd.xlane.f32.xlu0 %v364
    %v387 = vpop.xlane.xlu0 %386
    %388 = vadd.xlane.f32.xlu0 %v365
    %v389 = vpop.xlane.xlu0 %388
    %390 = vadd.xlane.f32.xlu0 %v366
    %v391 = vpop.xlane.xlu0 %390
    %392 = vadd.xlane.f32.xlu0 %v367
    %v393 = vpop.xlane.xlu0 %392
    %394 = vadd.xlane.f32.xlu0 %v368
    %v395 = vpop.xlane.xlu0 %394
    %396 = vadd.xlane.f32.xlu0 %v369
    %v397 = vpop.xlane.xlu0 %396
    %398 = vadd.xlane.f32.xlu0 %v370
    %v399 = vpop.xlane.xlu0 %398
    %400 = vadd.xlane.f32.xlu0 %v371
    %v401 = vpop.xlane.xlu0 %400
    %402 = vadd.xlane.f32.xlu0 %v372
    %v403 = vpop.xlane.xlu0 %402
    %404 = vadd.xlane.f32.xlu0 %v373
    %v405 = vpop.xlane.xlu0 %404
    %v406 = vmul.f32 %v375, 0.0078125
    %v407 = vmul.f32 %v377, 0.0078125
    %v408 = vmul.f32 %v379, 0.0078125
    %v409 = vmul.f32 %v381, 0.0078125
    %v410 = vmul.f32 %v383, 0.0078125
    %v411 = vmul.f32 %v385, 0.0078125
    %v412 = vmul.f32 %v387, 0.0078125
    %v413 = vmul.f32 %v389, 0.0078125
    %v414 = vmul.f32 %v391, 0.0078125
    %v415 = vmul.f32 %v393, 0.0078125
    %v416 = vmul.f32 %v395, 0.0078125
    %v417 = vmul.f32 %v397, 0.0078125
    %v418 = vmul.f32 %v399, 0.0078125
    %v419 = vmul.f32 %v401, 0.0078125
    %v420 = vmul.f32 %v403, 0.0078125
    %v421 = vmul.f32 %v405, 0.0078125
    %v422 = vsub.f32 %v358, %v406
    %v423 = vsub.f32 %v359, %v407
    %v424 = vsub.f32 %v360, %v408
    %v425 = vsub.f32 %v361, %v409
    %v426 = vsub.f32 %v362, %v410
    %v427 = vsub.f32 %v363, %v411
    %v428 = vsub.f32 %v364, %v412
    %v429 = vsub.f32 %v365, %v413
    %v430 = vsub.f32 %v366, %v414
    %v431 = vsub.f32 %v367, %v415
    %v432 = vsub.f32 %v368, %v416
    %v433 = vsub.f32 %v369, %v417
    %v434 = vsub.f32 %v370, %v418
    %v435 = vsub.f32 %v371, %v419
    %v436 = vsub.f32 %v372, %v420
    %v437 = vsub.f32 %v373, %v421
    %v438 = vmul.f32 %v422, %v422
    %v439 = vmul.f32 %v423, %v423
    %v440 = vmul.f32 %v424, %v424
    %v441 = vmul.f32 %v425, %v425
    %v442 = vmul.f32 %v426, %v426
    %v443 = vmul.f32 %v427, %v427
    %v444 = vmul.f32 %v428, %v428
    %v445 = vmul.f32 %v429, %v429
    %v446 = vmul.f32 %v430, %v430
    %v447 = vmul.f32 %v431, %v431
    %v448 = vmul.f32 %v432, %v432
    %v449 = vmul.f32 %v433, %v433
    %v450 = vmul.f32 %v434, %v434
    %v451 = vmul.f32 %v435, %v435
    %v452 = vmul.f32 %v436, %v436
    %v453 = vmul.f32 %v437, %v437
    %454 = vadd.xlane.f32.xlu0 %v438
    %v455 = vpop.xlane.xlu0 %454
    %456 = vadd.xlane.f32.xlu0 %v439
    %v457 = vpop.xlane.xlu0 %456
    %458 = vadd.xlane.f32.xlu0 %v440
    %v459 = vpop.xlane.xlu0 %458
    %460 = vadd.xlane.f32.xlu0 %v441
    %v461 = vpop.xlane.xlu0 %460
    %462 = vadd.xlane.f32.xlu0 %v442
    %v463 = vpop.xlane.xlu0 %462
    %464 = vadd.xlane.f32.xlu0 %v443
    %v465 = vpop.xlane.xlu0 %464
    %466 = vadd.xlane.f32.xlu0 %v444
    %v467 = vpop.xlane.xlu0 %466
    %468 = vadd.xlane.f32.xlu0 %v445
    %v469 = vpop.xlane.xlu0 %468
    %470 = vadd.xlane.f32.xlu0 %v446
    %v471 = vpop.xlane.xlu0 %470
    %472 = vadd.xlane.f32.xlu0 %v447
    %v473 = vpop.xlane.xlu0 %472
    %474 = vadd.xlane.f32.xlu0 %v448
    %v475 = vpop.xlane.xlu0 %474
    %476 = vadd.xlane.f32.xlu0 %v449
    %v477 = vpop.xlane.xlu0 %476
    %478 = vadd.xlane.f32.xlu0 %v450
    %v479 = vpop.xlane.xlu0 %478
    %480 = vadd.xlane.f32.xlu0 %v451
    %v481 = vpop.xlane.xlu0 %480
    %482 = vadd.xlane.f32.xlu0 %v452
    %v483 = vpop.xlane.xlu0 %482
    %484 = vadd.xlane.f32.xlu0 %v453
    %v485 = vpop.xlane.xlu0 %484
    %v486 = vmul.f32 %v455, 0.0078125
    %v487 = vmul.f32 %v457, 0.0078125
    %v488 = vmul.f32 %v459, 0.0078125
    %v489 = vmul.f32 %v461, 0.0078125
    %v490 = vmul.f32 %v463, 0.0078125
    %v491 = vmul.f32 %v465, 0.0078125
    %v492 = vmul.f32 %v467, 0.0078125
    %v493 = vmul.f32 %v469, 0.0078125
    %v494 = vmul.f32 %v471, 0.0078125
    %v495 = vmul.f32 %v473, 0.0078125
    %v496 = vmul.f32 %v475, 0.0078125
    %v497 = vmul.f32 %v477, 0.0078125
    %v498 = vmul.f32 %v479, 0.0078125
    %v499 = vmul.f32 %v481, 0.0078125
    %v500 = vmul.f32 %v483, 0.0078125
    %v501 = vmul.f32 %v485, 0.0078125
    %v502 = vadd.f32 %v486, 1e-05
    %v503 = vadd.f32 %v487, 1e-05
    %v504 = vadd.f32 %v488, 1e-05
    %v505 = vadd.f32 %v489, 1e-05
    %v506 = vadd.f32 %v490, 1e-05
    %v507 = vadd.f32 %v491, 1e-05
    %v508 = vadd.f32 %v492, 1e-05
    %v509 = vadd.f32 %v493, 1e-05
    %v510 = vadd.f32 %v494, 1e-05
    %v511 = vadd.f32 %v495, 1e-05
    %v512 = vadd.f32 %v496, 1e-05
    %v513 = vadd.f32 %v497, 1e-05
    %v514 = vadd.f32 %v498, 1e-05
    %v515 = vadd.f32 %v499, 1e-05
    %v516 = vadd.f32 %v500, 1e-05
    %v517 = vadd.f32 %v501, 1e-05
    %v518 = vrsqrt.pop %v502
    %v519 = vmul.f32 %v518, %v502
    %v520 = vmul.f32 %v519, %v518
    %v521 = vmul.f32 0.5, %v520
    %v522 = vsub.f32 1.5, %v521
    %v523 = vmul.f32 %v518, %v522
    %vm524 = vweird.f32 %v502
    %vm525 = vweird.f32 %v518
    %vm526 = vmor %vm524, %vm525
    %v527 = vsel %vm526, %v518, %v523
    %v528 = vrsqrt.pop %v503
    %v529 = vmul.f32 %v528, %v503
    %v530 = vmul.f32 %v529, %v528
    %v531 = vmul.f32 0.5, %v530
    %v532 = vsub.f32 1.5, %v531
    %v533 = vmul.f32 %v528, %v532
    %vm534 = vweird.f32 %v503
    %vm535 = vweird.f32 %v528
    %vm536 = vmor %vm534, %vm535
    %v537 = vsel %vm536, %v528, %v533
    %v538 = vrsqrt.pop %v504
    %v539 = vmul.f32 %v538, %v504
    %v540 = vmul.f32 %v539, %v538
    %v541 = vmul.f32 0.5, %v540
    %v542 = vsub.f32 1.5, %v541
    %v543 = vmul.f32 %v538, %v542
    %vm544 = vweird.f32 %v504
    %vm545 = vweird.f32 %v538
    %vm546 = vmor %vm544, %vm545
    %v547 = vsel %vm546, %v538, %v543
    %v548 = vrsqrt.pop %v505
    %v549 = vmul.f32 %v548, %v505
    %v550 = vmul.f32 %v549, %v548
    %v551 = vmul.f32 0.5, %v550
    %v552 = vsub.f32 1.5, %v551
    %v553 = vmul.f32 %v548, %v552
    %vm554 = vweird.f32 %v505
    %vm555 = vweird.f32 %v548
    %vm556 = vmor %vm554, %vm555
    %v557 = vsel %vm556, %v548, %v553
    %v558 = vrsqrt.pop %v506
    %v559 = vmul.f32 %v558, %v506
    %v560 = vmul.f32 %v559, %v558
    %v561 = vmul.f32 0.5, %v560
    %v562 = vsub.f32 1.5, %v561
    %v563 = vmul.f32 %v558, %v562
    %vm564 = vweird.f32 %v506
    %vm565 = vweird.f32 %v558
    %vm566 = vmor %vm564, %vm565
    %v567 = vsel %vm566, %v558, %v563
    %v568 = vrsqrt.pop %v507
    %v569 = vmul.f32 %v568, %v507
    %v570 = vmul.f32 %v569, %v568
    %v571 = vmul.f32 0.5, %v570
    %v572 = vsub.f32 1.5, %v571
    %v573 = vmul.f32 %v568, %v572
    %vm574 = vweird.f32 %v507
    %vm575 = vweird.f32 %v568
    %vm576 = vmor %vm574, %vm575
    %v577 = vsel %vm576, %v568, %v573
    %v578 = vrsqrt.pop %v508
    %v579 = vmul.f32 %v578, %v508
    %v580 = vmul.f32 %v579, %v578
    %v581 = vmul.f32 0.5, %v580
    %v582 = vsub.f32 1.5, %v581
    %v583 = vmul.f32 %v578, %v582
    %vm584 = vweird.f32 %v508
    %vm585 = vweird.f32 %v578
    %vm586 = vmor %vm584, %vm585
    %v587 = vsel %vm586, %v578, %v583
    %v588 = vrsqrt.pop %v509
    %v589 = vmul.f32 %v588, %v509
    %v590 = vmul.f32 %v589, %v588
    %v591 = vmul.f32 0.5, %v590
    %v592 = vsub.f32 1.5, %v591
    %v593 = vmul.f32 %v588, %v592
    %vm594 = vweird.f32 %v509
    %vm595 = vweird.f32 %v588
    %vm596 = vmor %vm594, %vm595
    %v597 = vsel %vm596, %v588, %v593
    %v598 = vrsqrt.pop %v510
    %v599 = vmul.f32 %v598, %v510
    %v600 = vmul.f32 %v599, %v598
    %v601 = vmul.f32 0.5, %v600
    %v602 = vsub.f32 1.5, %v601
    %v603 = vmul.f32 %v598, %v602
    %vm604 = vweird.f32 %v510
    %vm605 = vweird.f32 %v598
    %vm606 = vmor %vm604, %vm605
    %v607 = vsel %vm606, %v598, %v603
    %v608 = vrsqrt.pop %v511
    %v609 = vmul.f32 %v608, %v511
    %v610 = vmul.f32 %v609, %v608
    %v611 = vmul.f32 0.5, %v610
    %v612 = vsub.f32 1.5, %v611
    %v613 = vmul.f32 %v608, %v612
    %vm614 = vweird.f32 %v511
    %vm615 = vweird.f32 %v608
    %vm616 = vmor %vm614, %vm615
    %v617 = vsel %vm616, %v608, %v613
    %v618 = vrsqrt.pop %v512
    %v619 = vmul.f32 %v618, %v512
    %v620 = vmul.f32 %v619, %v618
    %v621 = vmul.f32 0.5, %v620
    %v622 = vsub.f32 1.5, %v621
    %v623 = vmul.f32 %v618, %v622
    %vm624 = vweird.f32 %v512
    %vm625 = vweird.f32 %v618
    %vm626 = vmor %vm624, %vm625
    %v627 = vsel %vm626, %v618, %v623
    %v628 = vrsqrt.pop %v513
    %v629 = vmul.f32 %v628, %v513
    %v630 = vmul.f32 %v629, %v628
    %v631 = vmul.f32 0.5, %v630
    %v632 = vsub.f32 1.5, %v631
    %v633 = vmul.f32 %v628, %v632
    %vm634 = vweird.f32 %v513
    %vm635 = vweird.f32 %v628
    %vm636 = vmor %vm634, %vm635
    %v637 = vsel %vm636, %v628, %v633
    %v638 = vrsqrt.pop %v514
    %v639 = vmul.f32 %v638, %v514
    %v640 = vmul.f32 %v639, %v638
    %v641 = vmul.f32 0.5, %v640
    %v642 = vsub.f32 1.5, %v641
    %v643 = vmul.f32 %v638, %v642
    %vm644 = vweird.f32 %v514
    %vm645 = vweird.f32 %v638
    %vm646 = vmor %vm644, %vm645
    %v647 = vsel %vm646, %v638, %v643
    %v648 = vrsqrt.pop %v515
    %v649 = vmul.f32 %v648, %v515
    %v650 = vmul.f32 %v649, %v648
    %v651 = vmul.f32 0.5, %v650
    %v652 = vsub.f32 1.5, %v651
    %v653 = vmul.f32 %v648, %v652
    %vm654 = vweird.f32 %v515
    %vm655 = vweird.f32 %v648
    %vm656 = vmor %vm654, %vm655
    %v657 = vsel %vm656, %v648, %v653
    %v658 = vrsqrt.pop %v516
    %v659 = vmul.f32 %v658, %v516
    %v660 = vmul.f32 %v659, %v658
    %v661 = vmul.f32 0.5, %v660
    %v662 = vsub.f32 1.5, %v661
    %v663 = vmul.f32 %v658, %v662
    %vm664 = vweird.f32 %v516
    %vm665 = vweird.f32 %v658
    %vm666 = vmor %vm664, %vm665
    %v667 = vsel %vm666, %v658, %v663
    %v668 = vrsqrt.pop %v517
    %v669 = vmul.f32 %v668, %v517
    %v670 = vmul.f32 %v669, %v668
    %v671 = vmul.f32 0.5, %v670
    %v672 = vsub.f32 1.5, %v671
    %v673 = vmul.f32 %v668, %v672
    %vm674 = vweird.f32 %v517
    %vm675 = vweird.f32 %v668
    %vm676 = vmor %vm674, %vm675
    %v677 = vsel %vm676, %v668, %v673
    %v678 = vmul.f32 %v52, %v527
    %v679 = vmul.f32 %v53, %v537
    %v680 = vmul.f32 %v54, %v547
    %v681 = vmul.f32 %v55, %v557
    %v682 = vmul.f32 %v56, %v567
    %v683 = vmul.f32 %v57, %v577
    %v684 = vmul.f32 %v58, %v587
    %v685 = vmul.f32 %v59, %v597
    %v686 = vmul.f32 %v60, %v607
    %v687 = vmul.f32 %v61, %v617
    %v688 = vmul.f32 %v62, %v627
    %v689 = vmul.f32 %v63, %v637
    %v690 = vmul.f32 %v64, %v647
    %v691 = vmul.f32 %v65, %v657
    %v692 = vmul.f32 %v66, %v667
    %v693 = vmul.f32 %v67, %v677
    %695 = vset.pattern.permute.xlu0 1
    %696 = vperm.xlu0 %695, %v678
    %v697 = vpop.permute.xlu0 %696
    %700 = vset.pattern.permute.xlu0 1
    %701 = vperm.xlu0 %700, %v679
    %v702 = vpop.permute.xlu0 %701
    %705 = vset.pattern.permute.xlu0 1
    %706 = vperm.xlu0 %705, %v680
    %v707 = vpop.permute.xlu0 %706
    %710 = vset.pattern.permute.xlu0 1
    %711 = vperm.xlu0 %710, %v681
    %v712 = vpop.permute.xlu0 %711
    %715 = vset.pattern.permute.xlu0 1
    %716 = vperm.xlu0 %715, %v682
    %v717 = vpop.permute.xlu0 %716
    %720 = vset.pattern.permute.xlu0 1
    %721 = vperm.xlu0 %720, %v683
    %v722 = vpop.permute.xlu0 %721
    %725 = vset.pattern.permute.xlu0 1
    %726 = vperm.xlu0 %725, %v684
    %v727 = vpop.permute.xlu0 %726
    %730 = vset.pattern.permute.xlu0 1
    %731 = vperm.xlu0 %730, %v685
    %v732 = vpop.permute.xlu0 %731
    %735 = vset.pattern.permute.xlu0 1
    %736 = vperm.xlu0 %735, %v686
    %v737 = vpop.permute.xlu0 %736
    %740 = vset.pattern.permute.xlu0 1
    %741 = vperm.xlu0 %740, %v687
    %v742 = vpop.permute.xlu0 %741
    %745 = vset.pattern.permute.xlu0 1
    %746 = vperm.xlu0 %745, %v688
    %v747 = vpop.permute.xlu0 %746
    %750 = vset.pattern.permute.xlu0 1
    %751 = vperm.xlu0 %750, %v689
    %v752 = vpop.permute.xlu0 %751
    %755 = vset.pattern.permute.xlu0 1
    %756 = vperm.xlu0 %755, %v690
    %v757 = vpop.permute.xlu0 %756
    %760 = vset.pattern.permute.xlu0 1
    %761 = vperm.xlu0 %760, %v691
    %v762 = vpop.permute.xlu0 %761
    %765 = vset.pattern.permute.xlu0 1
    %766 = vperm.xlu0 %765, %v692
    %v767 = vpop.permute.xlu0 %766
    %770 = vset.pattern.permute.xlu0 1
    %771 = vperm.xlu0 %770, %v693
    %v772 = vpop.permute.xlu0 %771
    %v774 = vmul.f32 %v422, %v697
    %v775 = vmul.f32 %v423, %v702
    %v776 = vmul.f32 %v424, %v707
    %v777 = vmul.f32 %v425, %v712
    %v778 = vmul.f32 %v426, %v717
    %v779 = vmul.f32 %v427, %v722
    %v780 = vmul.f32 %v428, %v727
    %v781 = vmul.f32 %v429, %v732
    %v782 = vmul.f32 %v430, %v737
    %v783 = vmul.f32 %v431, %v742
    %v784 = vmul.f32 %v432, %v747
    %v785 = vmul.f32 %v433, %v752
    %v786 = vmul.f32 %v434, %v757
    %v787 = vmul.f32 %v435, %v762
    %v788 = vmul.f32 %v436, %v767
    %v789 = vmul.f32 %v437, %v772
    %v790 = vld [vmem:[%s4] sm:$0xff]
    %v791 = vld [vmem:[%s4 + $0x8] sm:$0xff]
    %v792 = vld [vmem:[%s4 + $0x10] sm:$0xff]
    %v793 = vld [vmem:[%s4 + $0x18] sm:$0xff]
    %v794 = vld [vmem:[%s4 + $0x20] sm:$0xff]
    %v795 = vld [vmem:[%s4 + $0x28] sm:$0xff]
    %v796 = vld [vmem:[%s4 + $0x30] sm:$0xff]
    %v797 = vld [vmem:[%s4 + $0x38] sm:$0xff]
    %v798 = vld [vmem:[%s3] sm:$0xff]
    %v799 = vld [vmem:[%s3 + $0x8] sm:$0xff]
    %v800 = vld [vmem:[%s3 + $0x10] sm:$0xff]
    %v801 = vld [vmem:[%s3 + $0x18] sm:$0xff]
    %v802 = vld [vmem:[%s3 + $0x20] sm:$0xff]
    %v803 = vld [vmem:[%s3 + $0x28] sm:$0xff]
    %v804 = vld [vmem:[%s3 + $0x30] sm:$0xff]
    %v805 = vld [vmem:[%s3 + $0x38] sm:$0xff]
    %807 = vset.pattern.permute.xlu0 0
    %808 = vperm.xlu0 %807, %v790
    %v809 = vpop.permute.xlu0 %808
    %812 = vset.pattern.permute.xlu0 0
    %813 = vperm.xlu0 %812, %v791
    %v814 = vpop.permute.xlu0 %813
    %817 = vset.pattern.permute.xlu0 0
    %818 = vperm.xlu0 %817, %v792
    %v819 = vpop.permute.xlu0 %818
    %822 = vset.pattern.permute.xlu0 0
    %823 = vperm.xlu0 %822, %v793
    %v824 = vpop.permute.xlu0 %823
    %827 = vset.pattern.permute.xlu0 0
    %828 = vperm.xlu0 %827, %v794
    %v829 = vpop.permute.xlu0 %828
    %832 = vset.pattern.permute.xlu0 0
    %833 = vperm.xlu0 %832, %v795
    %v834 = vpop.permute.xlu0 %833
    %837 = vset.pattern.permute.xlu0 0
    %838 = vperm.xlu0 %837, %v796
    %v839 = vpop.permute.xlu0 %838
    %842 = vset.pattern.permute.xlu0 0
    %843 = vperm.xlu0 %842, %v797
    %v844 = vpop.permute.xlu0 %843
    %846 = vmatpush.msra.mxu0 %v789
    %847 = vmatpush.msra.mxu0 %v788
    %848 = vmatpush.msra.mxu0 %v787
    %849 = vmatpush.msra.mxu0 %v786
    %850 = vmatpush.msra.mxu0 %v785
    %851 = vmatpush.msra.mxu0 %v784
    %852 = vmatpush.msra.mxu0 %v783
    %853 = vmatpush.msra.mxu0 %v782
    %854 = vmatpush.msra.mxu0 %v781
    %855 = vmatpush.msra.mxu0 %v780
    %856 = vmatpush.msra.mxu0 %v779
    %857 = vmatpush.msra.mxu0 %v778
    %858 = vmatpush.msra.mxu0 %v777
    %859 = vmatpush.msra.mxu0 %v776
    %860 = vmatpush.msra.mxu0 %v775
    %861 = vmatpush.msra.mxu0 %v774
    %862 = vmatmul.f32.gmra.mxu0 %v798
    %v863 = vpop.f32.mrf.mxu0
    %v864 = vadd.f32 %v809, %v863
    %865 = vmatmul.f32.gmra.mxu0 %v799
    %v866 = vpop.f32.mrf.mxu0
    %v867 = vadd.f32 %v814, %v866
    %868 = vmatmul.f32.gmra.mxu0 %v800
    %v869 = vpop.f32.mrf.mxu0
    %v870 = vadd.f32 %v819, %v869
    %871 = vmatmul.f32.gmra.mxu0 %v801
    %v872 = vpop.f32.mrf.mxu0
    %v873 = vadd.f32 %v824, %v872
    %874 = vmatmul.f32.gmra.mxu0 %v802
    %v875 = vpop.f32.mrf.mxu0
    %v876 = vadd.f32 %v829, %v875
    %877 = vmatmul.f32.gmra.mxu0 %v803
    %v878 = vpop.f32.mrf.mxu0
    %v879 = vadd.f32 %v834, %v878
    %880 = vmatmul.f32.gmra.mxu0 %v804
    %v881 = vpop.f32.mrf.mxu0
    %v882 = vadd.f32 %v839, %v881
    %883 = vmatmul.f32.gmra.mxu0 %v805
    %v884 = vpop.f32.mrf.mxu0
    %v885 = vadd.f32 %v844, %v884
    %886 = vdwg.mxu0
    %vm887 = vcmp.ge.f32.partialorder %v864, 0.0
    %vm888 = vcmp.ge.f32.partialorder %v867, 0.0
    %vm889 = vcmp.ge.f32.partialorder %v870, 0.0
    %vm890 = vcmp.ge.f32.partialorder %v873, 0.0
    %vm891 = vcmp.ge.f32.partialorder %v876, 0.0
    %vm892 = vcmp.ge.f32.partialorder %v879, 0.0
    %vm893 = vcmp.ge.f32.partialorder %v882, 0.0
    %vm894 = vcmp.ge.f32.partialorder %v885, 0.0
    %v895 = vmul.f32 %v864, 0.01
    %v896 = vmul.f32 %v867, 0.01
    %v897 = vmul.f32 %v870, 0.01
    %v898 = vmul.f32 %v873, 0.01
    %v899 = vmul.f32 %v876, 0.01
    %v900 = vmul.f32 %v879, 0.01
    %v901 = vmul.f32 %v882, 0.01
    %v902 = vmul.f32 %v885, 0.01
    %v903 = vsel %vm887, %v864, %v895
    %v904 = vsel %vm888, %v867, %v896
    %v905 = vsel %vm889, %v870, %v897
    %v906 = vsel %vm890, %v873, %v898
    %v907 = vsel %vm891, %v876, %v899
    %v908 = vsel %vm892, %v879, %v900
    %v909 = vsel %vm893, %v882, %v901
    %v910 = vsel %vm894, %v885, %v902
    %911 = vadd.xlane.f32.xlu0 %v903
    %v912 = vpop.xlane.xlu0 %911
    %913 = vadd.xlane.f32.xlu0 %v904
    %v914 = vpop.xlane.xlu0 %913
    %915 = vadd.xlane.f32.xlu0 %v905
    %v916 = vpop.xlane.xlu0 %915
    %917 = vadd.xlane.f32.xlu0 %v906
    %v918 = vpop.xlane.xlu0 %917
    %919 = vadd.xlane.f32.xlu0 %v907
    %v920 = vpop.xlane.xlu0 %919
    %921 = vadd.xlane.f32.xlu0 %v908
    %v922 = vpop.xlane.xlu0 %921
    %923 = vadd.xlane.f32.xlu0 %v909
    %v924 = vpop.xlane.xlu0 %923
    %925 = vadd.xlane.f32.xlu0 %v910
    %v926 = vpop.xlane.xlu0 %925
    %v927 = vmul.f32 %v912, 0.0078125
    %v928 = vmul.f32 %v914, 0.0078125
    %v929 = vmul.f32 %v916, 0.0078125
    %v930 = vmul.f32 %v918, 0.0078125
    %v931 = vmul.f32 %v920, 0.0078125
    %v932 = vmul.f32 %v922, 0.0078125
    %v933 = vmul.f32 %v924, 0.0078125
    %v934 = vmul.f32 %v926, 0.0078125
    %v935 = vsub.f32 %v903, %v927
    %v936 = vsub.f32 %v904, %v928
    %v937 = vsub.f32 %v905, %v929
    %v938 = vsub.f32 %v906, %v930
    %v939 = vsub.f32 %v907, %v931
    %v940 = vsub.f32 %v908, %v932
    %v941 = vsub.f32 %v909, %v933
    %v942 = vsub.f32 %v910, %v934
    %v943 = vmul.f32 %v935, %v935
    %v944 = vmul.f32 %v936, %v936
    %v945 = vmul.f32 %v937, %v937
    %v946 = vmul.f32 %v938, %v938
    %v947 = vmul.f32 %v939, %v939
    %v948 = vmul.f32 %v940, %v940
    %v949 = vmul.f32 %v941, %v941
    %v950 = vmul.f32 %v942, %v942
    %951 = vadd.xlane.f32.xlu0 %v943
    %v952 = vpop.xlane.xlu0 %951
    %953 = vadd.xlane.f32.xlu0 %v944
    %v954 = vpop.xlane.xlu0 %953
    %955 = vadd.xlane.f32.xlu0 %v945
    %v956 = vpop.xlane.xlu0 %955
    %957 = vadd.xlane.f32.xlu0 %v946
    %v958 = vpop.xlane.xlu0 %957
    %959 = vadd.xlane.f32.xlu0 %v947
    %v960 = vpop.xlane.xlu0 %959
    %961 = vadd.xlane.f32.xlu0 %v948
    %v962 = vpop.xlane.xlu0 %961
    %963 = vadd.xlane.f32.xlu0 %v949
    %v964 = vpop.xlane.xlu0 %963
    %965 = vadd.xlane.f32.xlu0 %v950
    %v966 = vpop.xlane.xlu0 %965
    %v967 = vmul.f32 %v952, 0.0078125
    %v968 = vmul.f32 %v954, 0.0078125
    %v969 = vmul.f32 %v956, 0.0078125
    %v970 = vmul.f32 %v958, 0.0078125
    %v971 = vmul.f32 %v960, 0.0078125
    %v972 = vmul.f32 %v962, 0.0078125
    %v973 = vmul.f32 %v964, 0.0078125
    %v974 = vmul.f32 %v966, 0.0078125
    %v975 = vadd.f32 %v967, 1e-05
    %v976 = vadd.f32 %v968, 1e-05
    %v977 = vadd.f32 %v969, 1e-05
    %v978 = vadd.f32 %v970, 1e-05
    %v979 = vadd.f32 %v971, 1e-05
    %v980 = vadd.f32 %v972, 1e-05
    %v981 = vadd.f32 %v973, 1e-05
    %v982 = vadd.f32 %v974, 1e-05
    %v983 = vrsqrt.pop %v975
    %v984 = vmul.f32 %v983, %v975
    %v985 = vmul.f32 %v984, %v983
    %v986 = vmul.f32 0.5, %v985
    %v987 = vsub.f32 1.5, %v986
    %v988 = vmul.f32 %v983, %v987
    %vm989 = vweird.f32 %v975
    %vm990 = vweird.f32 %v983
    %vm991 = vmor %vm989, %vm990
    %v992 = vsel %vm991, %v983, %v988
    %v993 = vrsqrt.pop %v976
    %v994 = vmul.f32 %v993, %v976
    %v995 = vmul.f32 %v994, %v993
    %v996 = vmul.f32 0.5, %v995
    %v997 = vsub.f32 1.5, %v996
    %v998 = vmul.f32 %v993, %v997
    %vm999 = vweird.f32 %v976
    %vm1000 = vweird.f32 %v993
    %vm1001 = vmor %vm999, %vm1000
    %v1002 = vsel %vm1001, %v993, %v998
    %v1003 = vrsqrt.pop %v977
    %v1004 = vmul.f32 %v1003, %v977
    %v1005 = vmul.f32 %v1004, %v1003
    %v1006 = vmul.f32 0.5, %v1005
    %v1007 = vsub.f32 1.5, %v1006
    %v1008 = vmul.f32 %v1003, %v1007
    %vm1009 = vweird.f32 %v977
    %vm1010 = vweird.f32 %v1003
    %vm1011 = vmor %vm1009, %vm1010
    %v1012 = vsel %vm1011, %v1003, %v1008
    %v1013 = vrsqrt.pop %v978
    %v1014 = vmul.f32 %v1013, %v978
    %v1015 = vmul.f32 %v1014, %v1013
    %v1016 = vmul.f32 0.5, %v1015
    %v1017 = vsub.f32 1.5, %v1016
    %v1018 = vmul.f32 %v1013, %v1017
    %vm1019 = vweird.f32 %v978
    %vm1020 = vweird.f32 %v1013
    %vm1021 = vmor %vm1019, %vm1020
    %v1022 = vsel %vm1021, %v1013, %v1018
    %v1023 = vrsqrt.pop %v979
    %v1024 = vmul.f32 %v1023, %v979
    %v1025 = vmul.f32 %v1024, %v1023
    %v1026 = vmul.f32 0.5, %v1025
    %v1027 = vsub.f32 1.5, %v1026
    %v1028 = vmul.f32 %v1023, %v1027
    %vm1029 = vweird.f32 %v979
    %vm1030 = vweird.f32 %v1023
    %vm1031 = vmor %vm1029, %vm1030
    %v1032 = vsel %vm1031, %v1023, %v1028
    %v1033 = vrsqrt.pop %v980
    %v1034 = vmul.f32 %v1033, %v980
    %v1035 = vmul.f32 %v1034, %v1033
    %v1036 = vmul.f32 0.5, %v1035
    %v1037 = vsub.f32 1.5, %v1036
    %v1038 = vmul.f32 %v1033, %v1037
    %vm1039 = vweird.f32 %v980
    %vm1040 = vweird.f32 %v1033
    %vm1041 = vmor %vm1039, %vm1040
    %v1042 = vsel %vm1041, %v1033, %v1038
    %v1043 = vrsqrt.pop %v981
    %v1044 = vmul.f32 %v1043, %v981
    %v1045 = vmul.f32 %v1044, %v1043
    %v1046 = vmul.f32 0.5, %v1045
    %v1047 = vsub.f32 1.5, %v1046
    %v1048 = vmul.f32 %v1043, %v1047
    %vm1049 = vweird.f32 %v981
    %vm1050 = vweird.f32 %v1043
    %vm1051 = vmor %vm1049, %vm1050
    %v1052 = vsel %vm1051, %v1043, %v1048
    %v1053 = vrsqrt.pop %v982
    %v1054 = vmul.f32 %v1053, %v982
    %v1055 = vmul.f32 %v1054, %v1053
    %v1056 = vmul.f32 0.5, %v1055
    %v1057 = vsub.f32 1.5, %v1056
    %v1058 = vmul.f32 %v1053, %v1057
    %vm1059 = vweird.f32 %v982
    %vm1060 = vweird.f32 %v1053
    %vm1061 = vmor %vm1059, %vm1060
    %v1062 = vsel %vm1061, %v1053, %v1058
    %v1063 = vmul.f32 %v790, %v992
    %v1064 = vmul.f32 %v791, %v1002
    %v1065 = vmul.f32 %v792, %v1012
    %v1066 = vmul.f32 %v793, %v1022
    %v1067 = vmul.f32 %v794, %v1032
    %v1068 = vmul.f32 %v795, %v1042
    %v1069 = vmul.f32 %v796, %v1052
    %v1070 = vmul.f32 %v797, %v1062
    %1072 = vset.pattern.permute.xlu0 1
    %1073 = vperm.xlu0 %1072, %v1063
    %v1074 = vpop.permute.xlu0 %1073
    %1077 = vset.pattern.permute.xlu0 1
    %1078 = vperm.xlu0 %1077, %v1064
    %v1079 = vpop.permute.xlu0 %1078
    %1082 = vset.pattern.permute.xlu0 1
    %1083 = vperm.xlu0 %1082, %v1065
    %v1084 = vpop.permute.xlu0 %1083
    %1087 = vset.pattern.permute.xlu0 1
    %1088 = vperm.xlu0 %1087, %v1066
    %v1089 = vpop.permute.xlu0 %1088
    %1092 = vset.pattern.permute.xlu0 1
    %1093 = vperm.xlu0 %1092, %v1067
    %v1094 = vpop.permute.xlu0 %1093
    %1097 = vset.pattern.permute.xlu0 1
    %1098 = vperm.xlu0 %1097, %v1068
    %v1099 = vpop.permute.xlu0 %1098
    %1102 = vset.pattern.permute.xlu0 1
    %1103 = vperm.xlu0 %1102, %v1069
    %v1104 = vpop.permute.xlu0 %1103
    %1107 = vset.pattern.permute.xlu0 1
    %1108 = vperm.xlu0 %1107, %v1070
    %v1109 = vpop.permute.xlu0 %1108
    %v1111 = vmul.f32 %v935, %v1074
    %v1112 = vmul.f32 %v936, %v1079
    %v1113 = vmul.f32 %v937, %v1084
    %v1114 = vmul.f32 %v938, %v1089
    %v1115 = vmul.f32 %v939, %v1094
    %v1116 = vmul.f32 %v940, %v1099
    %v1117 = vmul.f32 %v941, %v1104
    %v1118 = vmul.f32 %v942, %v1109
    %v1119 = vld [vmem:[%s6] sm:$0xff]
    %v1120 = vld [vmem:[%s6 + $0x8] sm:$0xff]
    %v1121 = vld [vmem:[%s5] sm:$0xff]
    %v1122 = vld [vmem:[%s5 + $0x8] sm:$0xff]
    %1124 = vset.pattern.permute.xlu0 0
    %1125 = vperm.xlu0 %1124, %v1119
    %v1126 = vpop.permute.xlu0 %1125
    %1129 = vset.pattern.permute.xlu0 0
    %1130 = vperm.xlu0 %1129, %v1120
    %v1131 = vpop.permute.xlu0 %1130
    %vm1133 = vcmask 523264
    %v1135 = vsel %vm1133, %v1121, 0
    %v1138 = vsel %vm1133, %v1122, 0
    %1140 = vmatpush.msra.mxu0 0.0
    %1141 = vmatpush.msra.mxu0 0.0
    %1142 = vmatpush.msra.mxu0 0.0
    %1143 = vmatpush.msra.mxu0 0.0
    %1144 = vmatpush.msra.mxu0 0.0
    %1145 = vmatpush.msra.mxu0 0.0
    %1146 = vmatpush.msra.mxu0 0.0
    %1147 = vmatpush.msra.mxu0 0.0
    %1148 = vmatpush.msra.mxu0 %v1118
    %1149 = vmatpush.msra.mxu0 %v1117
    %1150 = vmatpush.msra.mxu0 %v1116
    %1151 = vmatpush.msra.mxu0 %v1115
    %1152 = vmatpush.msra.mxu0 %v1114
    %1153 = vmatpush.msra.mxu0 %v1113
    %1154 = vmatpush.msra.mxu0 %v1112
    %1155 = vmatpush.msra.mxu0 %v1111
    %1156 = vmatmul.f32.gmra.mxu0 %v1135
    %v1157 = vpop.f32.mrf.mxu0
    %v1158 = vadd.f32 %v1126, %v1157
    %1159 = vmatmul.f32.gmra.mxu0 %v1138
    %v1160 = vpop.f32.mrf.mxu0
    %v1161 = vadd.f32 %v1131, %v1160
    %1162 = vdwg.mxu0
    %vm1163 = vcmp.ge.f32.partialorder %v1158, 0.0
    %vm1164 = vcmp.ge.f32.partialorder %v1161, 0.0
    %v1165 = vmul.f32 %v1158, 0.01
    %v1166 = vmul.f32 %v1161, 0.01
    %v1167 = vsel %vm1163, %v1158, %v1165
    %v1168 = vsel %vm1164, %v1161, %v1166
    %1169 = vadd.xlane.f32.xlu0 %v1167
    %v1170 = vpop.xlane.xlu0 %1169
    %1171 = vadd.xlane.f32.xlu0 %v1168
    %v1172 = vpop.xlane.xlu0 %1171
    %v1173 = vmul.f32 %v1170, 0.0078125
    %v1174 = vmul.f32 %v1172, 0.0078125
    %v1175 = vsub.f32 %v1167, %v1173
    %v1176 = vsub.f32 %v1168, %v1174
    %v1177 = vmul.f32 %v1175, %v1175
    %v1178 = vmul.f32 %v1176, %v1176
    %1179 = vadd.xlane.f32.xlu0 %v1177
    %v1180 = vpop.xlane.xlu0 %1179
    %1181 = vadd.xlane.f32.xlu0 %v1178
    %v1182 = vpop.xlane.xlu0 %1181
    %v1183 = vmul.f32 %v1180, 0.0078125
    %v1184 = vmul.f32 %v1182, 0.0078125
    %v1185 = vadd.f32 %v1183, 1e-05
    %v1186 = vadd.f32 %v1184, 1e-05
    %v1187 = vrsqrt.pop %v1185
    %v1188 = vmul.f32 %v1187, %v1185
    %v1189 = vmul.f32 %v1188, %v1187
    %v1190 = vmul.f32 0.5, %v1189
    %v1191 = vsub.f32 1.5, %v1190
    %v1192 = vmul.f32 %v1187, %v1191
    %vm1193 = vweird.f32 %v1185
    %vm1194 = vweird.f32 %v1187
    %vm1195 = vmor %vm1193, %vm1194
    %v1196 = vsel %vm1195, %v1187, %v1192
    %v1197 = vrsqrt.pop %v1186
    %v1198 = vmul.f32 %v1197, %v1186
    %v1199 = vmul.f32 %v1198, %v1197
    %v1200 = vmul.f32 0.5, %v1199
    %v1201 = vsub.f32 1.5, %v1200
    %v1202 = vmul.f32 %v1197, %v1201
    %vm1203 = vweird.f32 %v1186
    %vm1204 = vweird.f32 %v1197
    %vm1205 = vmor %vm1203, %vm1204
    %v1206 = vsel %vm1205, %v1197, %v1202
    %v1207 = vmul.f32 %v1119, %v1196
    %v1208 = vmul.f32 %v1120, %v1206
    %1210 = vset.pattern.permute.xlu0 1
    %1211 = vperm.xlu0 %1210, %v1207
    %v1212 = vpop.permute.xlu0 %1211
    %1215 = vset.pattern.permute.xlu0 1
    %1216 = vperm.xlu0 %1215, %v1208
    %v1217 = vpop.permute.xlu0 %1216
    %v1219 = vmul.f32 %v1175, %v1212
    %v1220 = vmul.f32 %v1176, %v1217
    %v1221 = vld [vmem:[%s8] sm:$0xff]
    %v1222 = vld [vmem:[%s7] sm:$0xff]
    %1224 = vset.pattern.permute.xlu0 0
    %1225 = vperm.xlu0 %1224, %v1221
    %v1226 = vpop.permute.xlu0 %1225
    %vm1228 = vcmask 130048
    %v1230 = vsel %vm1228, %v1222, 0
    %1232 = vmatpush.msra.mxu0 0.0
    %1233 = vmatpush.msra.mxu0 0.0
    %1234 = vmatpush.msra.mxu0 0.0
    %1235 = vmatpush.msra.mxu0 0.0
    %1236 = vmatpush.msra.mxu0 0.0
    %1237 = vmatpush.msra.mxu0 0.0
    %1238 = vmatpush.msra.mxu0 0.0
    %1239 = vmatpush.msra.mxu0 0.0
    %1240 = vmatpush.msra.mxu0 0.0
    %1241 = vmatpush.msra.mxu0 0.0
    %1242 = vmatpush.msra.mxu0 0.0
    %1243 = vmatpush.msra.mxu0 0.0
    %1244 = vmatpush.msra.mxu0 0.0
    %1245 = vmatpush.msra.mxu0 0.0
    %1246 = vmatpush.msra.mxu0 %v1220
    %1247 = vmatpush.msra.mxu0 %v1219
    %1248 = vmatmul.f32.gmra.mxu0 %v1230
    %v1249 = vpop.f32.mrf.mxu0
    %v1250 = vadd.f32 %v1226, %v1249
    %1251 = vdwg.mxu0
    %vm1252 = vcmp.ge.f32.partialorder %v1250, 0.0
    %v1253 = vmul.f32 %v1250, 0.01
    %v1254 = vsel %vm1252, %v1250, %v1253
    %1255 = vadd.xlane.f32.xlu0 %v1254
    %v1256 = vpop.xlane.xlu0 %1255
    %v1257 = vmul.f32 %v1256, 0.0078125
    %v1258 = vsub.f32 %v1254, %v1257
    %v1259 = vmul.f32 %v1258, %v1258
    %1260 = vadd.xlane.f32.xlu0 %v1259
    %v1261 = vpop.xlane.xlu0 %1260
    %v1262 = vmul.f32 %v1261, 0.0078125
    %v1263 = vadd.f32 %v1262, 1e-05
    %v1264 = vrsqrt.pop %v1263
    %v1265 = vmul.f32 %v1264, %v1263
    %v1266 = vmul.f32 %v1265, %v1264
    %v1267 = vmul.f32 0.5, %v1266
    %v1268 = vsub.f32 1.5, %v1267
    %v1269 = vmul.f32 %v1264, %v1268
    %vm1270 = vweird.f32 %v1263
    %vm1271 = vweird.f32 %v1264
    %vm1272 = vmor %vm1270, %vm1271
    %v1273 = vsel %vm1272, %v1264, %v1269
    %v1274 = vmul.f32 %v1221, %v1273
    %1276 = vset.pattern.permute.xlu0 1
    %1277 = vperm.xlu0 %1276, %v1274
    %v1278 = vpop.permute.xlu0 %1277
    %v1280 = vmul.f32 %v1258, %v1278
    %v1281 = vld [vmem:[%s9] sm:$0xff]
    %v1282 = vld [vmem:[%s9 + $0x8] sm:$0x1]
    %1284 = vset.pattern.permute.xlu0 0
    %1285 = vperm.xlu0 %1284, %v1281
    %v1286 = vpop.permute.xlu0 %1285
    %v1288 = vmul.f32 %v1280, %v1286
    %v1289 = vrot.slane %v1288, 4
    %v1290 = vadd.f32 %v1288, %v1289
    %v1291 = vrot.slane %v1290, 2
    %v1292 = vadd.f32 %v1290, %v1291
    %v1293 = vrot.slane %v1292, 1
    %v1294 = vadd.f32 %v1292, %v1293
    %1296 = vset.pattern.permute.xlu0 0
    %1297 = vperm.xlu0 %1296, %v1282
    %v1298 = vpop.permute.xlu0 %1297
    %v1300 = vadd.f32 %v1294, %v1298
    %v1301 = vxor.u32 %v1300, 2147483648
    %v1302 = vmul.f32 %v1301, 1.442695
    %v1303 = vpow.pop %v1302
    %v1304 = vadd.f32 %v1303, 1.0
    %v1305 = vrcp.pop %v1304
    %v1306 = vmul.f32 %v1304, %v1305
    %v1307 = vsub.f32 1.0, %v1306
    %v1308 = vmul.f32 %v1305, %v1307
    %v1309 = vadd.f32 %v1305, %v1308
    %vm1310 = vweird.f32 %v1304
    %vm1311 = vweird.f32 %v1305
    %vm1312 = vmor %vm1310, %vm1311
    %v1313 = vsel %vm1312, %v1305, %v1309
    %v1314 = vand.u32 2147483647, %v1304
    %vm1315 = vcmp.eq.f32.partialorder %v1314, 8.507059e+37
    %v1316 = vand.u32 %v1304, 2147483648
    %v1317 = vor.u32 1.1754944e-38, %v1316
    %v1318 = vsel %vm1315, %v1317, %v1313
    %v1319 = vmul.f32 1.0, %v1318
    %1320 = vst [vmem:[#allocation2] sm:$0x1] %v1319
    // Predicated region
    $region42: #{neural_network_forward.1} parent=1 // pred_check
      _
    $region43: #{neural_network_forward.1} parent=1 // pred_check_branch
      %1322 = sbr.rel (0) target = $region45
    $region44: #{neural_network_forward.1} parent=1 // pred_region
      %1324 = vsyncadd [#allocation3], 0
      %s1326 = sshll.u32 [#allocation2], 4
      %s1327 = int_to_ptr.vmem [resolvable:$true] %s1326
      %s1328 = sshll.u32 %s10, 4
      %s1329 = int_to_ptr.hbm [resolvable:$true] %s1328
      %1331 = dma.vmem_to_hbm [thread:$0]  %s1327, 16, %s1329, [#allocation3]
    $region45: #{neural_network_forward.1} parent=1 // pred_fallthru
      _
    // Predicated region
    $region46: #{neural_network_forward.1} parent=1 // pred_check
      _
    $region47: #{neural_network_forward.1} parent=1 // pred_check_branch
      %1333 = sbr.rel (0) target = $region49
    $region48: #{neural_network_forward.1} parent=1 // pred_region
      %1335 = dma.done [#allocation3], 16
    $region49: #{neural_network_forward.1} parent=1 // pred_fallthru
      _
    %1336 = vsyncpa [#allocation3], 1

</llo_original>
